<compile_context>
chip_gen: v7x
topology: tpu7x:2x2x1
jax: 0.10.0
libtpu: 0.0.40
codegen_flags: <defaults>
</compile_context>

<pallas_src>
import functools

import jax
import jax.numpy as jnp
from jax.experimental import pallas as pl
from jax.experimental.pallas import tpu as pltpu

BN_EPS = 1e-5


def _round_up(x, m):
    return ((x + m - 1) // m) * m


# ----------------------------- kernels ------------------------------------


def _conv_stats_kernel(w_ref, p_ref, y_ref, sum_ref, ssq_ref):
    # w_ref:   [F, CKK]   bf16 conv weight (resident across the grid)
    # p_ref:   [CKK, TM]  bf16 im2col^T tile (M on lanes, lane-dense)
    # y_ref:   [F, TM]    f32 conv output tile (lane-dense)
    # sum_ref: [1, F, 1]  f32 per-tile per-channel sum
    # ssq_ref: [1, F, 1]  f32 per-tile per-channel sum of squares
    y = jnp.dot(w_ref[...], p_ref[...], preferred_element_type=jnp.float32)
    y_ref[...] = y
    sum_ref[...] = jnp.sum(y, axis=1, keepdims=True)[None]
    ssq_ref[...] = jnp.sum(y * y, axis=1, keepdims=True)[None]


def _bn_apply_kernel(scale_ref, shift_ref, y_ref, o_ref):
    # scale/shift: [F, 1] f32 (resident, folded gamma/beta/mean/var)
    # y_ref / o_ref: [F, TM] f32
    o_ref[...] = y_ref[...] * scale_ref[...] + shift_ref[...]


# ----------------------------- glue ----------------------------------------


def _im2col_T_nhwc(x_nhwc, K, stride):
    """Plain-JAX glue: [N,H,W,C] -> ([K*K*C, N*Ho*Wo], Ho, Wo), valid conv."""
    # TODO(synk): for very large inputs, replace this K*K replication with a
    # grid axis over (ki,kj) + shifted-window BlockSpecs to avoid the HBM copy.
    N, H, W, C = x_nhwc.shape
    Ho = (H - K) // stride + 1
    Wo = (W - K) // stride + 1
    cols = []
    for ki in range(K):
        for kj in range(K):
            cols.append(
                x_nhwc[:, ki:ki + (Ho - 1) * stride + 1:stride,
                          kj:kj + (Wo - 1) * stride + 1:stride, :])
    p = jnp.stack(cols, axis=0)            # [KK, N, Ho, Wo, C]
    p = jnp.transpose(p, (0, 4, 1, 2, 3))  # [KK, C, N, Ho, Wo]
    return p.reshape(K * K * C, N * Ho * Wo), Ho, Wo


@functools.partial(jax.jit, static_argnames=("stride", "tm"))
def conv_block_forward(x, weight, gamma, beta, *, stride=1, tm=512):
    """ConvBlock.forward: BatchNorm2d(Conv2d(x, bias=False)), training-mode BN."""
    N, C, H, W = x.shape
    F, Cw, K, _ = weight.shape
    assert C == Cw

    # NCHW -> NHWC, cast to bf16 BEFORE im2col so the replicated tensor is bf16.
    x_nhwc = jnp.transpose(x, (0, 2, 3, 1)).astype(jnp.bfloat16)
    pT, Ho, Wo = _im2col_T_nhwc(x_nhwc, K, stride)          # [CKK, M] bf16
    CKK, M = pT.shape

    # Match patch ordering: w2d[f, (ki*K+kj)*C + c] = weight[f, c, ki, kj]
    w2d = jnp.transpose(weight, (0, 2, 3, 1)).reshape(F, CKK).astype(jnp.bfloat16)

    # Lane-axis tiling: TM multiple of 128, pad M with zero columns.
    TM = min(tm, _round_up(M, 128))
    Mp = _round_up(M, TM)
    pT = jnp.pad(pT, ((0, 0), (0, Mp - M)))
    n_tiles = Mp // TM

    # ---- Kernel 1: conv matmul + per-tile partial BN statistics ------------
    y_flat, sum_part, ssq_part = pl.pallas_call(
        _conv_stats_kernel,
        grid=(n_tiles,),
        in_specs=[
            pl.BlockSpec((F, CKK), lambda i: (0, 0)),     # weight, resident
            pl.BlockSpec((CKK, TM), lambda i: (0, i)),    # patches^T tile
        ],
        out_specs=[
            pl.BlockSpec((F, TM), lambda i: (0, i)),      # conv output tile
            pl.BlockSpec((1, F, 1), lambda i: (i, 0, 0)),  # per-tile sum
            pl.BlockSpec((1, F, 1), lambda i: (i, 0, 0)),  # per-tile sumsq
        ],
        out_shape=(
            jax.ShapeDtypeStruct((F, Mp), jnp.float32),
            jax.ShapeDtypeStruct((n_tiles, F, 1), jnp.float32),
            jax.ShapeDtypeStruct((n_tiles, F, 1), jnp.float32),
        ),
        compiler_params=pltpu.CompilerParams(
            dimension_semantics=("parallel",)),
        cost_estimate=pl.CostEstimate(
            flops=2 * F * CKK * Mp,
            transcendentals=0,
            bytes_accessed=(CKK * Mp * 2 + F * CKK * 2
                            + F * Mp * 4 + 2 * n_tiles * F * 4)),
    )(w2d, pT)

    # ---- tiny glue: combine partials, fold BN constants once ---------------
    # Padded columns contribute exactly 0 to both partials; divide by true M.
    sums = jnp.sum(sum_part[:, :, 0], axis=0)     # [F]
    ssqs = jnp.sum(ssq_part[:, :, 0], axis=0)     # [F]
    inv_m = jnp.float32(1.0 / M)
    mean = sums * inv_m
    var = jnp.maximum(ssqs * inv_m - mean * mean, 0.0)   # biased var (f32 acc)
    scale = gamma.astype(jnp.float32) * jax.lax.rsqrt(var + BN_EPS)
    shift = beta.astype(jnp.float32) - mean * scale
    scale2d = scale.reshape(F, 1)
    shift2d = shift.reshape(F, 1)

    # ---- Kernel 2: normalize (single fused multiply-add per element) -------
    out_flat = pl.pallas_call(
        _bn_apply_kernel,
        grid=(n_tiles,),
        in_specs=[
            pl.BlockSpec((F, 1), lambda i: (0, 0)),       # scale, resident
            pl.BlockSpec((F, 1), lambda i: (0, 0)),       # shift, resident
            pl.BlockSpec((F, TM), lambda i: (0, i)),      # conv output tile
        ],
        out_specs=pl.BlockSpec((F, TM), lambda i: (0, i)),
        out_shape=jax.ShapeDtypeStruct((F, Mp), jnp.float32),
        compiler_params=pltpu.CompilerParams(
            dimension_semantics=("parallel",)),
        cost_estimate=pl.CostEstimate(
            flops=2 * F * Mp, transcendentals=0,
            bytes_accessed=2 * F * Mp * 4 + 2 * F * 4),
    )(scale2d, shift2d, y_flat)

    # [F, Mp] -> [F, M] -> [F, N, Ho, Wo] -> NCHW [N, F, Ho, Wo]
    out = out_flat[:, :M].reshape(F, N, Ho, Wo)
    return jnp.transpose(out, (1, 0, 2, 3))


# ----------------------------- reference & test ----------------------------


def _reference(x, weight, gamma, beta, stride):
    """Pure-JAX reference of Conv2d(bias=False) + training-mode BatchNorm2d."""
    y = jax.lax.conv_general_dilated(
        x.astype(jnp.float32), weight.astype(jnp.float32),
        window_strides=(stride, stride), padding="VALID",
        dimension_numbers=("NCHW", "OIHW", "NCHW"),
        precision=jax.lax.Precision.HIGHEST)
    mean = jnp.mean(y, axis=(0, 2, 3), keepdims=True)
    var = jnp.mean((y - mean) ** 2, axis=(0, 2, 3), keepdims=True)
    g = gamma.reshape(1, -1, 1, 1)
    b = beta.reshape(1, -1, 1, 1)
    return (y - mean) * jax.lax.rsqrt(var + BN_EPS) * g + b


if __name__ == "__main__":
    # ConvBlock(input_filters=4, n_filters=8, kernel_size=3, stride=1)
    # applied to x of shape [2, 4, 16, 16].
    N, C, H, W = 2, 4, 16, 16
    Fo, K, stride = 8, 3, 1

    key = jax.random.PRNGKey(0)
    kx, kw, kg, kb = jax.random.split(key, 4)
    x = jax.random.normal(kx, (N, C, H, W), dtype=jnp.float32)
    weight = 0.1 * jax.random.normal(kw, (Fo, C, K, K), dtype=jnp.float32)
    # BatchNorm affine params (PyTorch default gamma=1, beta=0; use non-trivial
    # deterministic values to exercise the affine path).
    gamma = 1.0 + 0.1 * jax.random.normal(kg, (Fo,), dtype=jnp.float32)
    beta = 0.1 * jax.random.normal(kb, (Fo,), dtype=jnp.float32)

    out = conv_block_forward(x, weight, gamma, beta, stride=stride)
    out = jax.block_until_ready(out)

    ref = _reference(x, weight, gamma, beta, stride)
    assert out.shape == ref.shape == (N, Fo, (H - K) // stride + 1, (W - K) // stride + 1)
    if not bool(jnp.allclose(out, ref, rtol=1e-2, atol=2e-2)):
        raise AssertionError("Pallas ConvBlock output mismatch vs reference")

    print("KERNEL_OK")
</pallas_src>

<mosaic_0001>
module attributes {stable_mosaic.version = 11 : i64} {
  func.func @_conv_stats_kernel(%arg0: i32, %arg1: memref<8x36xbf16, #tpu.memory_space<vmem>>, %arg2: memref<36x512xbf16, #tpu.memory_space<vmem>>, %arg3: memref<8x512xf32, #tpu.memory_space<vmem>>, %arg4: memref<1x8x1xf32, #tpu.memory_space<vmem>>, %arg5: memref<1x8x1xf32, #tpu.memory_space<vmem>>) attributes {dimension_semantics = [#tpu.dimension_semantics<parallel>], iteration_bounds = array<i64: 1>, scalar_prefetch = 0 : i64, scratch_operands = 0 : i64, tpu.core_type = #tpu.core_type<tc>, window_params = [{pipeline_mode = #tpu.pipeline_mode<synchronous>, transform_indices = @transform_0, window_bounds = array<i64: 8, 36>}, {transform_indices = @transform_1, window_bounds = array<i64: 36, 512>}, {transform_indices = @transform_2, window_bounds = array<i64: 8, 512>}, {transform_indices = @transform_3, window_bounds = array<i64: 1, 8, 1>}, {transform_indices = @transform_4, window_bounds = array<i64: 1, 8, 1>}]} {
    %c0 = arith.constant 0 : index
    %c0_0 = arith.constant 0 : index
    %0 = vector.load %arg1[%c0, %c0_0] : memref<8x36xbf16, #tpu.memory_space<vmem>>, vector<8x36xbf16>
    %c0_1 = arith.constant 0 : index
    %c0_2 = arith.constant 0 : index
    %1 = vector.load %arg2[%c0_1, %c0_2] : memref<36x512xbf16, #tpu.memory_space<vmem>>, vector<36x512xbf16>
    %cst = arith.constant dense<0.000000e+00> : vector<8x512xf32>
    %2 = tpu.matmul %0, %1, %cst {dimension_numbers = #tpu.dot_dimension_numbers<[1], [0], [0], [1], [0, 0, 1, 1], [], []>} : vector<8x36xbf16>, vector<36x512xbf16>, vector<8x512xf32> -> vector<8x512xf32>
    %c0_3 = arith.constant 0 : index
    %c0_4 = arith.constant 0 : index
    %3 = vector.load %arg3[%c0_3, %c0_4] : memref<8x512xf32, #tpu.memory_space<vmem>>, vector<8x512xf32>
    tpu.vector_store %arg3[%c0_3, %c0_4], %2 {strides = array<i32>} : memref<8x512xf32, #tpu.memory_space<vmem>>, vector<8x512xf32>,
    %cst_5 = arith.constant dense<0.000000e+00> : vector<8xf32>
    %4 = vector.multi_reduction <add>, %2, %cst_5 [1] : vector<8x512xf32> to vector<8xf32>
    %5 = vector.shape_cast %4 : vector<8xf32> to vector<8x1xf32>
    %6 = vector.shape_cast %5 : vector<8x1xf32> to vector<1x8x1xf32>
    %c0_6 = arith.constant 0 : index
    %c0_7 = arith.constant 0 : index
    %c0_8 = arith.constant 0 : index
    %7 = vector.load %arg4[%c0_6, %c0_7, %c0_8] : memref<1x8x1xf32, #tpu.memory_space<vmem>>, vector<1x8x1xf32>
    tpu.vector_store %arg4[%c0_6, %c0_7, %c0_8], %6 {strides = array<i32>} : memref<1x8x1xf32, #tpu.memory_space<vmem>>, vector<1x8x1xf32>,
    %8 = arith.mulf %2, %2 : vector<8x512xf32>
    %cst_9 = arith.constant dense<0.000000e+00> : vector<8xf32>
    %9 = vector.multi_reduction <add>, %8, %cst_9 [1] : vector<8x512xf32> to vector<8xf32>
    %10 = vector.shape_cast %9 : vector<8xf32> to vector<8x1xf32>
    %11 = vector.shape_cast %10 : vector<8x1xf32> to vector<1x8x1xf32>
    %c0_10 = arith.constant 0 : index
    %c0_11 = arith.constant 0 : index
    %c0_12 = arith.constant 0 : index
    %12 = vector.load %arg5[%c0_10, %c0_11, %c0_12] : memref<1x8x1xf32, #tpu.memory_space<vmem>>, vector<1x8x1xf32>
    tpu.vector_store %arg5[%c0_10, %c0_11, %c0_12], %11 {strides = array<i32>} : memref<1x8x1xf32, #tpu.memory_space<vmem>>, vector<1x8x1xf32>,
    return
  }
  func.func @transform_0(%arg0: i32) -> (i32, i32) {
    %c0_i32 = arith.constant 0 : i32
    %c0_i32_0 = arith.constant 0 : i32
    %c0_i32_1 = arith.constant 0 : i32
    return %c0_i32, %c0_i32_0 : i32, i32
  }
  func.func @transform_1(%arg0: i32) -> (i32, i32) {
    %c0_i32 = arith.constant 0 : i32
    %c0_i32_0 = arith.constant 0 : i32
    return %c0_i32, %arg0 : i32, i32
  }
  func.func @transform_2(%arg0: i32) -> (i32, i32) {
    %c0_i32 = arith.constant 0 : i32
    %c0_i32_0 = arith.constant 0 : i32
    return %c0_i32, %arg0 : i32, i32
  }
  func.func @transform_3(%arg0: i32) -> (i32, i32, i32) {
    %c0_i32 = arith.constant 0 : i32
    %c0_i32_0 = arith.constant 0 : i32
    %c0_i32_1 = arith.constant 0 : i32
    return %arg0, %c0_i32, %c0_i32_0 : i32, i32, i32
  }
  func.func @transform_4(%arg0: i32) -> (i32, i32, i32) {
    %c0_i32 = arith.constant 0 : i32
    %c0_i32_0 = arith.constant 0 : i32
    %c0_i32_1 = arith.constant 0 : i32
    return %arg0, %c0_i32, %c0_i32_0 : i32, i32, i32
  }
}

module attributes {stable_mosaic.version = 11 : i64} {
  func.func @_bn_apply_kernel(%arg0: i32, %arg1: memref<8x1xf32, #tpu.memory_space<vmem>>, %arg2: memref<8x1xf32, #tpu.memory_space<vmem>>, %arg3: memref<8x512xf32, #tpu.memory_space<vmem>>, %arg4: memref<8x512xf32, #tpu.memory_space<vmem>>) attributes {dimension_semantics = [#tpu.dimension_semantics<parallel>], iteration_bounds = array<i64: 1>, scalar_prefetch = 0 : i64, scratch_operands = 0 : i64, tpu.core_type = #tpu.core_type<tc>, window_params = [{pipeline_mode = #tpu.pipeline_mode<synchronous>, transform_indices = @transform_0, window_bounds = array<i64: 8, 1>}, {pipeline_mode = #tpu.pipeline_mode<synchronous>, transform_indices = @transform_1, window_bounds = array<i64: 8, 1>}, {transform_indices = @transform_2, window_bounds = array<i64: 8, 512>}, {transform_indices = @transform_3, window_bounds = array<i64: 8, 512>}]} {
    %c0 = arith.constant 0 : index
    %c0_0 = arith.constant 0 : index
    %0 = vector.load %arg3[%c0, %c0_0] : memref<8x512xf32, #tpu.memory_space<vmem>>, vector<8x512xf32>
    %c0_1 = arith.constant 0 : index
    %c0_2 = arith.constant 0 : index
    %1 = vector.load %arg1[%c0_1, %c0_2] : memref<8x1xf32, #tpu.memory_space<vmem>>, vector<8x1xf32>
    %2 = vector.broadcast %1 : vector<8x1xf32> to vector<8x512xf32>
    %3 = arith.mulf %0, %2 : vector<8x512xf32>
    %c0_3 = arith.constant 0 : index
    %c0_4 = arith.constant 0 : index
    %4 = vector.load %arg2[%c0_3, %c0_4] : memref<8x1xf32, #tpu.memory_space<vmem>>, vector<8x1xf32>
    %5 = vector.broadcast %4 : vector<8x1xf32> to vector<8x512xf32>
    %6 = arith.addf %3, %5 : vector<8x512xf32>
    %c0_5 = arith.constant 0 : index
    %c0_6 = arith.constant 0 : index
    %7 = vector.load %arg4[%c0_5, %c0_6] : memref<8x512xf32, #tpu.memory_space<vmem>>, vector<8x512xf32>
    tpu.vector_store %arg4[%c0_5, %c0_6], %6 {strides = array<i32>} : memref<8x512xf32, #tpu.memory_space<vmem>>, vector<8x512xf32>,
    return
  }
  func.func @transform_0(%arg0: i32) -> (i32, i32) {
    %c0_i32 = arith.constant 0 : i32
    %c0_i32_0 = arith.constant 0 : i32
    %c0_i32_1 = arith.constant 0 : i32
    return %c0_i32, %c0_i32_0 : i32, i32
  }
  func.func @transform_1(%arg0: i32) -> (i32, i32) {
    %c0_i32 = arith.constant 0 : i32
    %c0_i32_0 = arith.constant 0 : i32
    %c0_i32_1 = arith.constant 0 : i32
    return %c0_i32, %c0_i32_0 : i32, i32
  }
  func.func @transform_2(%arg0: i32) -> (i32, i32) {
    %c0_i32 = arith.constant 0 : i32
    %c0_i32_0 = arith.constant 0 : i32
    return %c0_i32, %arg0 : i32, i32
  }
  func.func @transform_3(%arg0: i32) -> (i32, i32) {
    %c0_i32 = arith.constant 0 : i32
    %c0_i32_0 = arith.constant 0 : i32
    return %c0_i32, %arg0 : i32, i32
  }
}

</mosaic_0001>

<llo_original>
// kernel: conv_block_forward.3
$region0: #{conv_block_forward.3}
  #allocation0 [shape = 'u32[]', space=smem, size = 0x4, offset = 0x4, fixed_abs, tag = 'smem constant byte address 0x4 - core index']
  #allocation1 [shape = 'u32[144,128]{1,0:T(1,128)}', space=vmem, size = 0x12000, scoped, tag = 'internal scratch']
  %s0 = inlined_call_operand.vmem [shape: f32[8,1], index: 0, kind: input, shape index: {}]
  %s1 = inlined_call_operand.vmem [shape: f32[8,1], index: 1, kind: input, shape index: {}]
  %s2 = inlined_call_operand.vmem [shape: f32[8,512], index: 2, kind: input, shape index: {}]
  %s3 = inlined_call_operand.vmem [shape: f32[8,512], index: 3, kind: output, shape index: {}]
  %s4 = sld [smem:[#allocation0]]
  $region22: #{conv_block_forward.3} parent=0
    _
  %s6 = ssub.s32 1, %s4
  %s7 = scalar_select 0, %s6, %s4
  // Predicated region
  $region2: #{conv_block_forward.3} parent=0 // pred_check
    _
  $region3: #{conv_block_forward.3} parent=0 // pred_check_branch
    %9 = sbr.rel (0) target = $region5
  $region4: #{conv_block_forward.3} parent=0 // pred_region
    _
  $region5: #{conv_block_forward.3} parent=0 // pred_fallthru
    _
  // Predicated region
  $region6: #{conv_block_forward.3} parent=0 // pred_check
    _
  $region7: #{conv_block_forward.3} parent=0 // pred_check_branch
    %11 = sbr.rel (0) target = $region9
  $region8: #{conv_block_forward.3} parent=0 // pred_region
    _
  $region9: #{conv_block_forward.3} parent=0 // pred_fallthru
    _
  // Predicated region
  $region10: #{conv_block_forward.3} parent=0 // pred_check
    _
  $region11: #{conv_block_forward.3} parent=0 // pred_check_branch
    %13 = sbr.rel (0) target = $region13
  $region12: #{conv_block_forward.3} parent=0 // pred_region
    _
  $region13: #{conv_block_forward.3} parent=0 // pred_fallthru
    _
  %v14 = vld [vmem:[%s2] sm:$0xff]
  %v15 = vld [vmem:[%s2 + $0x8] sm:$0xff]
  %v16 = vld [vmem:[%s2 + $0x10] sm:$0xff]
  %v17 = vld [vmem:[%s2 + $0x18] sm:$0xff]
  %v18 = vld [vmem:[%s0] sm:$0xff]
  %20 = vset.pattern.permute.xlu0 0
  %21 = vperm.xlu0 %20, %v18
  %v22 = vpop.permute.xlu0 %21
  %v24 = vmul.f32 %v14, %v22
  %v25 = vmul.f32 %v15, %v22
  %v26 = vmul.f32 %v16, %v22
  %v27 = vmul.f32 %v17, %v22
  %v28 = vld [vmem:[%s1] sm:$0xff]
  %30 = vset.pattern.permute.xlu0 0
  %31 = vperm.xlu0 %30, %v28
  %v32 = vpop.permute.xlu0 %31
  %v34 = vadd.f32 %v24, %v32
  %v35 = vadd.f32 %v25, %v32
  %v36 = vadd.f32 %v26, %v32
  %v37 = vadd.f32 %v27, %v32
  %38 = vst [vmem:[%s3] sm:$0xff] %v34
  %39 = vst [vmem:[%s3 + $0x8] sm:$0xff] %v35
  %40 = vst [vmem:[%s3 + $0x10] sm:$0xff] %v36
  %41 = vst [vmem:[%s3 + $0x18] sm:$0xff] %v37
  // Predicated region
  $region14: #{conv_block_forward.3} parent=0 // pred_check
    _
  $region15: #{conv_block_forward.3} parent=0 // pred_check_branch
    %43 = sbr.rel (0) target = $region17
  $region16: #{conv_block_forward.3} parent=0 // pred_region
    _
  $region17: #{conv_block_forward.3} parent=0 // pred_fallthru
    _
  // Predicated region
  $region18: #{conv_block_forward.3} parent=0 // pred_check
    _
  $region19: #{conv_block_forward.3} parent=0 // pred_check_branch
    %45 = sbr.rel (0) target = $region21
  $region20: #{conv_block_forward.3} parent=0 // pred_region
    _
  $region21: #{conv_block_forward.3} parent=0 // pred_fallthru
    _

// kernel: conv_block_forward.2
$region0: #{conv_block_forward.2}
  #allocation0 [shape = 'u32[]', space=smem, size = 0x4, offset = 0x4, fixed_abs, tag = 'smem constant byte address 0x4 - core index']
  #allocation1 [shape = 'u32[144,128]{1,0:T(1,128)}', space=vmem, size = 0x12000, scoped, tag = 'internal scratch']
  %s0 = inlined_call_operand.vmem [shape: bf16[8,36], index: 0, kind: input, shape index: {}]
  %s1 = inlined_call_operand.vmem [shape: bf16[36,512], index: 1, kind: input, shape index: {}]
  %s2 = inlined_call_operand.vmem [shape: f32[8,512], index: 2, kind: output, shape index: {0}]
  %s3 = inlined_call_operand.vmem [shape: f32[1,8,1], index: 3, kind: output, shape index: {1}]
  %s4 = inlined_call_operand.vmem [shape: f32[1,8,1], index: 4, kind: output, shape index: {2}]
  %5 = xla_tuple %s2, %s3, %s4
  %s6 = sld [smem:[#allocation0]]
  $region34: #{conv_block_forward.2} parent=0
    _
  %s8 = ssub.s32 1, %s6
  %s9 = scalar_select 0, %s8, %s6
  // Predicated region
  $region2: #{conv_block_forward.2} parent=0 // pred_check
    _
  $region3: #{conv_block_forward.2} parent=0 // pred_check_branch
    %11 = sbr.rel (0) target = $region5
  $region4: #{conv_block_forward.2} parent=0 // pred_region
    _
  $region5: #{conv_block_forward.2} parent=0 // pred_fallthru
    _
  // Predicated region
  $region6: #{conv_block_forward.2} parent=0 // pred_check
    _
  $region7: #{conv_block_forward.2} parent=0 // pred_check_branch
    %13 = sbr.rel (0) target = $region9
  $region8: #{conv_block_forward.2} parent=0 // pred_region
    _
  $region9: #{conv_block_forward.2} parent=0 // pred_fallthru
    _
  %v15 = vld [vmem:[%s0] sm:$0xf]
  %v16 = vld [vmem:[%s1] sm:$0xff]
  %v17 = vld [vmem:[%s1 + $0x8] sm:$0xff]
  %v18 = vld [vmem:[%s1 + $0x10] sm:$0xff]
  %v19 = vld [vmem:[%s1 + $0x18] sm:$0xff]
  %v20 = vld [vmem:[%s1 + $0x20] sm:$0xff]
  %v21 = vld [vmem:[%s1 + $0x28] sm:$0xff]
  %v22 = vld [vmem:[%s1 + $0x30] sm:$0xff]
  %v23 = vld [vmem:[%s1 + $0x38] sm:$0xff]
  %v24 = vld [vmem:[%s1 + $0x40] sm:$0x33]
  %v25 = vld [vmem:[%s1 + $0x48] sm:$0x33]
  %v36 = vunpack.c.l.b16 %v16
  %v37 = vunpack.c.h.b16 %v16
  %v38 = vunpack.c.l.b16 %v17
  %v39 = vunpack.c.h.b16 %v17
  %v40 = vunpack.c.l.b16 %v18
  %v41 = vunpack.c.h.b16 %v18
  %v42 = vunpack.c.l.b16 %v19
  %v43 = vunpack.c.h.b16 %v19
  %v44 = vunpack.c.l.b16 %v20
  %v45 = vunpack.c.h.b16 %v20
  %v46 = vunpack.c.l.b16 %v21
  %v47 = vunpack.c.h.b16 %v21
  %v48 = vunpack.c.l.b16 %v22
  %v49 = vunpack.c.h.b16 %v22
  %v50 = vunpack.c.l.b16 %v23
  %v51 = vunpack.c.h.b16 %v23
  %v52 = vunpack.c.l.b16 %v24
  %v53 = vunpack.c.h.b16 %v24
  %v54 = vunpack.c.l.b16 %v25
  %v55 = vunpack.c.h.b16 %v25
  %v56 = vpack.c.b16 %v40, %v36
  %v57 = vpack.c.b16 %v41, %v37
  %v58 = vpack.c.b16 %v42, %v38
  %v59 = vpack.c.b16 %v43, %v39
  %v60 = vpack.c.b16 %v48, %v44
  %v61 = vpack.c.b16 %v49, %v45
  %v62 = vpack.c.b16 %v50, %v46
  %v63 = vpack.c.b16 %v51, %v47
  %v64 = vpack.c.b16 %v52, %v52
  %v65 = vpack.c.b16 %v53, %v53
  %v66 = vpack.c.b16 %v54, %v54
  %v67 = vpack.c.b16 %v55, %v55
  %vm76 = vcmask 293888
  %v78 = vsel %vm76, %v15, 0
  %vm80 = vcmask 1041408
  %v82 = vsel %vm80, %v64, 0
  %v85 = vsel %vm80, %v65, 0
  %v88 = vsel %vm80, %v66, 0
  %v91 = vsel %vm80, %v67, 0
  %93 = vmatprep.subr.bf16.mxu0 %v57
  %94 = vmatpush1.bf16.msra.mxu0 %v56
  %95 = vmatprep.subr.bf16.mxu0 %v61
  %96 = vmatpush1.bf16.msra.mxu0 %v60
  %97 = vmatprep.subr.bf16.mxu0 %v85
  %98 = vmatpush1.bf16.msra.mxu0 %v82
  %99 = vmatprep.subr.bf16.mxu0 0
  %100 = vmatpush1.bf16.msra.mxu0 0
  %101 = vmatprep.subr.bf16.mxu0 0
  %102 = vmatpush1.bf16.msra.mxu0 0
  %103 = vmatprep.subr.bf16.mxu0 0
  %104 = vmatpush1.bf16.msra.mxu0 0
  %105 = vmatprep.subr.bf16.mxu0 0
  %106 = vmatpush1.bf16.msra.mxu0 0
  %107 = vmatprep.subr.bf16.mxu0 0
  %108 = vmatpush1.bf16.msra.mxu0 0
  %109 = vmatprep.subr.bf16.mxu0 0
  %110 = vmatpush1.bf16.msra.mxu0 0
  %111 = vmatprep.subr.bf16.mxu0 0
  %112 = vmatpush1.bf16.msra.mxu0 0
  %113 = vmatprep.subr.bf16.mxu0 0
  %114 = vmatpush1.bf16.msra.mxu0 0
  %115 = vmatprep.subr.bf16.mxu0 0
  %116 = vmatpush1.bf16.msra.mxu0 0
  %117 = vmatprep.subr.bf16.mxu0 0
  %118 = vmatpush1.bf16.msra.mxu0 0
  %119 = vmatprep.subr.bf16.mxu0 0
  %120 = vmatpush1.bf16.msra.mxu0 0
  %121 = vmatprep.subr.bf16.mxu0 0
  %122 = vmatpush1.bf16.msra.mxu0 0
  %123 = vmatprep.subr.bf16.mxu0 0
  %124 = vmatpush1.bf16.msra.mxu0 0
  %125 = vmatprep.mubr.bf16.mxu0 0
  %126 = vmatmul.mubr.bf16.gmra.mrb[0].mxu0 %v78
  %v127 = vpop.f32.mrb[0].mxu0
  %v128 = vadd.f32 0.0, %v127
  %v129 = vpop.f32.mrb[0].mxu0
  %v130 = vadd.f32 0.0, %v129
  %v131 = vpop.f32.mrb[0].mxu0
  %v132 = vpop.f32.mrb[0].mxu0
  %133 = vdwg.mxu0
  %134 = vmatprep.subr.bf16.mxu0 %v59
  %135 = vmatpush1.bf16.msra.mxu0 %v58
  %136 = vmatprep.subr.bf16.mxu0 %v63
  %137 = vmatpush1.bf16.msra.mxu0 %v62
  %138 = vmatprep.subr.bf16.mxu0 %v91
  %139 = vmatpush1.bf16.msra.mxu0 %v88
  %140 = vmatprep.subr.bf16.mxu0 0
  %141 = vmatpush1.bf16.msra.mxu0 0
  %142 = vmatprep.subr.bf16.mxu0 0
  %143 = vmatpush1.bf16.msra.mxu0 0
  %144 = vmatprep.subr.bf16.mxu0 0
  %145 = vmatpush1.bf16.msra.mxu0 0
  %146 = vmatprep.subr.bf16.mxu0 0
  %147 = vmatpush1.bf16.msra.mxu0 0
  %148 = vmatprep.subr.bf16.mxu0 0
  %149 = vmatpush1.bf16.msra.mxu0 0
  %150 = vmatprep.subr.bf16.mxu0 0
  %151 = vmatpush1.bf16.msra.mxu0 0
  %152 = vmatprep.subr.bf16.mxu0 0
  %153 = vmatpush1.bf16.msra.mxu0 0
  %154 = vmatprep.subr.bf16.mxu0 0
  %155 = vmatpush1.bf16.msra.mxu0 0
  %156 = vmatprep.subr.bf16.mxu0 0
  %157 = vmatpush1.bf16.msra.mxu0 0
  %158 = vmatprep.subr.bf16.mxu0 0
  %159 = vmatpush1.bf16.msra.mxu0 0
  %160 = vmatprep.subr.bf16.mxu0 0
  %161 = vmatpush1.bf16.msra.mxu0 0
  %162 = vmatprep.subr.bf16.mxu0 0
  %163 = vmatpush1.bf16.msra.mxu0 0
  %164 = vmatprep.subr.bf16.mxu0 0
  %165 = vmatpush1.bf16.msra.mxu0 0
  %166 = vmatprep.mubr.bf16.mxu0 0
  %167 = vmatmul.mubr.bf16.gmra.mrb[0].mxu0 %v78
  %v168 = vpop.f32.mrb[0].mxu0
  %v169 = vadd.f32 0.0, %v168
  %v170 = vpop.f32.mrb[0].mxu0
  %v171 = vadd.f32 0.0, %v170
  %v172 = vpop.f32.mrb[0].mxu0
  %v173 = vpop.f32.mrb[0].mxu0
  %174 = vdwg.mxu0
  %175 = vst [vmem:[%s2] sm:$0xff] %v128
  %176 = vst [vmem:[%s2 + $0x8] sm:$0xff] %v130
  %177 = vst [vmem:[%s2 + $0x10] sm:$0xff] %v169
  %178 = vst [vmem:[%s2 + $0x18] sm:$0xff] %v171
  %v179 = vadd.f32 %v128, %v130
  %v180 = vadd.f32 %v179, %v169
  %v181 = vadd.f32 %v180, %v171
  %182 = vadd.xlane.f32.xlu0 %v181
  %v183 = vpop.xlane.xlu0 %182
  %vm184 = vcmask 7168
  %185 = vst.msk [vmem:[%s3] sm:$0xff] %vm184, %v183
  %v186 = vmul.f32 %v128, %v128
  %v187 = vmul.f32 %v130, %v130
  %v188 = vmul.f32 %v169, %v169
  %v189 = vmul.f32 %v171, %v171
  %v190 = vadd.f32 %v186, %v187
  %v191 = vadd.f32 %v190, %v188
  %v192 = vadd.f32 %v191, %v189
  %193 = vadd.xlane.f32.xlu0 %v192
  %v194 = vpop.xlane.xlu0 %193
  %195 = vst.msk [vmem:[%s4] sm:$0xff] %vm184, %v194
  // Predicated region
  $region10: #{conv_block_forward.2} parent=0 // pred_check
    _
  $region11: #{conv_block_forward.2} parent=0 // pred_check_branch
    %197 = sbr.rel (0) target = $region13
  $region12: #{conv_block_forward.2} parent=0 // pred_region
    _
  $region13: #{conv_block_forward.2} parent=0 // pred_fallthru
    _
  // Predicated region
  $region14: #{conv_block_forward.2} parent=0 // pred_check
    _
  $region15: #{conv_block_forward.2} parent=0 // pred_check_branch
    %199 = sbr.rel (0) target = $region17
  $region16: #{conv_block_forward.2} parent=0 // pred_region
    _
  $region17: #{conv_block_forward.2} parent=0 // pred_fallthru
    _
  // Predicated region
  $region18: #{conv_block_forward.2} parent=0 // pred_check
    _
  $region19: #{conv_block_forward.2} parent=0 // pred_check_branch
    %201 = sbr.rel (0) target = $region21
  $region20: #{conv_block_forward.2} parent=0 // pred_region
    _
  $region21: #{conv_block_forward.2} parent=0 // pred_fallthru
    _
  // Predicated region
  $region22: #{conv_block_forward.2} parent=0 // pred_check
    _
  $region23: #{conv_block_forward.2} parent=0 // pred_check_branch
    %203 = sbr.rel (0) target = $region25
  $region24: #{conv_block_forward.2} parent=0 // pred_region
    _
  $region25: #{conv_block_forward.2} parent=0 // pred_fallthru
    _
  // Predicated region
  $region26: #{conv_block_forward.2} parent=0 // pred_check
    _
  $region27: #{conv_block_forward.2} parent=0 // pred_check_branch
    %205 = sbr.rel (0) target = $region29
  $region28: #{conv_block_forward.2} parent=0 // pred_region
    _
  $region29: #{conv_block_forward.2} parent=0 // pred_fallthru
    _
  // Predicated region
  $region30: #{conv_block_forward.2} parent=0 // pred_check
    _
  $region31: #{conv_block_forward.2} parent=0 // pred_check_branch
    %207 = sbr.rel (0) target = $region33
  $region32: #{conv_block_forward.2} parent=0 // pred_region
    _
  $region33: #{conv_block_forward.2} parent=0 // pred_fallthru
    _

</llo_original>
